<compile_context>
chip_gen: v6e
topology: v6e:2x2x1
jax: 0.10.0
libtpu: 0.0.40
codegen_flags: <defaults>
</compile_context>

<pallas_src>
import functools

import jax
import jax.numpy as jnp
from jax.experimental import pallas as pl
from jax.experimental.pallas import tpu as pltpu

LANE = 128  # pad hidden / out feature dims to this inside VMEM for full vregs


def _round_up(x, m):
    return ((x + m - 1) // m) * m


def mlp_decoder_kernel(z_ref, w1_ref, b1_ref, w2_ref, b2_ref, o_ref, *, out_ch):
    # Cast z to bf16 in-kernel (VPU; free under the HBM bound) for the MXU fast path.
    z = z_ref[...].astype(jnp.bfloat16)
    # First linear: bf16 MXU operands, f32 accumulation; bias + ReLU in f32 (VPU).
    h = jnp.dot(z, w1_ref[...], preferred_element_type=jnp.float32)
    h = jnp.maximum(h + b1_ref[...], 0.0)
    # Second linear at full 128-lane width (MXU cycles are slack here).
    y = jnp.dot(h.astype(jnp.bfloat16), w2_ref[...],
                preferred_element_type=jnp.float32)
    # Narrow write: only the real output columns leave the kernel.
    o_ref[...] = (y[:, :out_ch] + b2_ref[...]).astype(o_ref.dtype)


def prepare_weights(w1, b1, w2, b2):
    """One-time pad/cast of the (tiny) resident weights; hoist out of the hot path."""
    in_ch, hid = w1.shape
    out_ch = w2.shape[1]
    hid_p = _round_up(max(hid, LANE), LANE)
    out_p = _round_up(max(out_ch, LANE), LANE)

    # Zero padding: padded W1 columns (with zero bias) -> relu(0)=0 hidden acts;
    # padded W2 rows are zero, so padded lanes contribute nothing to real cols.
    w1_p = jnp.zeros((in_ch, hid_p), jnp.bfloat16).at[:, :hid].set(
        w1.astype(jnp.bfloat16))
    b1_p = jnp.zeros((1, hid_p), jnp.float32).at[0, :hid].set(
        b1.reshape(-1).astype(jnp.float32))
    w2_p = jnp.zeros((hid_p, out_p), jnp.bfloat16).at[:hid, :out_ch].set(
        w2.astype(jnp.bfloat16))
    b2_r = b2.reshape(1, out_ch).astype(jnp.float32)
    return w1_p, b1_p, w2_p, b2_r, out_ch


def mlp_decoder_prepared(z, w1_p, b1_p, w2_p, b2_r, out_ch, *, tile_m=None):
    N, in_ch = z.shape
    hid_p = w1_p.shape[1]
    out_p = w2_p.shape[1]

    if tile_m is None:
        if N <= 1024:
            tile_m = N
        else:
            # Amortize per-step overhead, but keep >= 2 row tiles so the
            # "parallel" axis can shard across v7x's two TensorCores.
            tile_m = min(1024, _round_up(pl.cdiv(N, 2), 8))
    grid = (pl.cdiv(N, tile_m),)
    # VMEM note: double-buffered z tile + out tile at tile_m=1024 is well under
    # the 32 MiB scoped default on all generations (incl. v7x's 64 MiB part).

    flops = 2 * N * (in_ch * hid_p + hid_p * out_p)
    bytes_accessed = (z.size * z.dtype.itemsize
                      + w1_p.size * 2 + w2_p.size * 2
                      + b1_p.size * 4 + b2_r.size * 4
                      + N * out_ch * z.dtype.itemsize)
    cost = pl.CostEstimate(flops=flops, transcendentals=0,
                           bytes_accessed=bytes_accessed)

    kernel = functools.partial(mlp_decoder_kernel, out_ch=out_ch)

    return pl.pallas_call(
        kernel,
        out_shape=jax.ShapeDtypeStruct((N, out_ch), z.dtype),
        grid_spec=pltpu.PrefetchScalarGridSpec(
            num_scalar_prefetch=0,
            grid=grid,
            in_specs=[
                pl.BlockSpec((tile_m, in_ch), lambda i: (i, 0)),   # z row-tile
                # Resident weights/bias: constant index_map -> same VMEM block
                # reused across grid steps (no per-step re-DMA).
                pl.BlockSpec((in_ch, hid_p), lambda i: (0, 0)),    # W1
                pl.BlockSpec((1, hid_p),     lambda i: (0, 0)),    # b1
                pl.BlockSpec((hid_p, out_p), lambda i: (0, 0)),    # W2
                pl.BlockSpec((1, out_ch),    lambda i: (0, 0)),    # b2 (unpadded)
            ],
            out_specs=pl.BlockSpec((tile_m, out_ch), lambda i: (i, 0)),
        ),
        compiler_params=pltpu.CompilerParams(
            dimension_semantics=("parallel",)),
        cost_estimate=cost,
    )(z, w1_p, b1_p, w2_p, b2_r)


def mlp_decoder(z, w1, b1, w2, b2, *, tile_m=None):
    """z: [N, in_ch]; w1: [in_ch, hid]; b1: [hid]; w2: [hid, out]; b2: [out]."""
    w1_p, b1_p, w2_p, b2_r, out_ch = prepare_weights(w1, b1, w2, b2)
    return mlp_decoder_prepared(z, w1_p, b1_p, w2_p, b2_r, out_ch, tile_m=tile_m)


def reference_mlp(z, w1, b1, w2, b2):
    h = jnp.maximum(z @ w1 + b1.reshape(1, -1), 0.0)
    return h @ w2 + b2.reshape(1, -1)


if __name__ == "__main__":
    # Shapes consistent with MLPDecoder(in_channels=32, out_channels=48, hidden_channels=64)
    N = 8
    in_channels = 32
    hidden_channels = 64
    out_channels = 48

    key = jax.random.PRNGKey(0)
    kz, k1, k2, k3, k4 = jax.random.split(key, 5)

    z = jax.random.normal(kz, (N, in_channels), dtype=jnp.float32)
    lim1 = 1.0 / jnp.sqrt(in_channels)
    lim2 = 1.0 / jnp.sqrt(hidden_channels)
    w1 = jax.random.uniform(k1, (in_channels, hidden_channels), jnp.float32,
                            minval=-lim1, maxval=lim1)
    b1 = jax.random.uniform(k2, (hidden_channels,), jnp.float32,
                            minval=-lim1, maxval=lim1)
    w2 = jax.random.uniform(k3, (hidden_channels, out_channels), jnp.float32,
                            minval=-lim2, maxval=lim2)
    b2 = jax.random.uniform(k4, (out_channels,), jnp.float32,
                            minval=-lim2, maxval=lim2)

    out = mlp_decoder(z, w1, b1, w2, b2)
    out = jax.block_until_ready(out)

    ref = reference_mlp(z, w1, b1, w2, b2)
    assert out.shape == (N, out_channels), out.shape
    # bf16 MXU operands with f32 accumulation -> relaxed tolerance vs f32 reference.
    assert jnp.allclose(out, ref, atol=3e-2, rtol=3e-2), "mismatch vs reference"

    # Remainder-row-tile check: N not divisible by tile_m (grid=2, partial last block).
    N2 = 200
    z2 = jax.random.normal(jax.random.PRNGKey(1), (N2, in_channels), jnp.float32)
    out2 = jax.block_until_ready(mlp_decoder(z2, w1, b1, w2, b2, tile_m=128))
    ref2 = reference_mlp(z2, w1, b1, w2, b2)
    assert out2.shape == (N2, out_channels), out2.shape
    assert jnp.allclose(out2, ref2, atol=3e-2, rtol=3e-2), "mismatch (remainder tile)"

    print("KERNEL_OK")
</pallas_src>

<mosaic_0001>
module attributes {stable_mosaic.version = 11 : i64} {
  func.func @mlp_decoder_kernel(%arg0: i32, %arg1: memref<8x32xf32, #tpu.memory_space<vmem>>, %arg2: memref<32x128xbf16, #tpu.memory_space<vmem>>, %arg3: memref<1x128xf32, #tpu.memory_space<vmem>>, %arg4: memref<128x128xbf16, #tpu.memory_space<vmem>>, %arg5: memref<1x48xf32, #tpu.memory_space<vmem>>, %arg6: memref<8x48xf32, #tpu.memory_space<vmem>>) attributes {dimension_semantics = [#tpu.dimension_semantics<parallel>], iteration_bounds = array<i64: 1>, scalar_prefetch = 0 : i64, scratch_operands = 0 : i64, tpu.core_type = #tpu.core_type<tc>, window_params = [{transform_indices = @transform_0, window_bounds = array<i64: 8, 32>}, {pipeline_mode = #tpu.pipeline_mode<synchronous>, transform_indices = @transform_1, window_bounds = array<i64: 32, 128>}, {pipeline_mode = #tpu.pipeline_mode<synchronous>, transform_indices = @transform_2, window_bounds = array<i64: 1, 128>}, {pipeline_mode = #tpu.pipeline_mode<synchronous>, transform_indices = @transform_3, window_bounds = array<i64: 128, 128>}, {pipeline_mode = #tpu.pipeline_mode<synchronous>, transform_indices = @transform_4, window_bounds = array<i64: 1, 48>}, {transform_indices = @transform_5, window_bounds = array<i64: 8, 48>}]} {
    %c0 = arith.constant 0 : index
    %c0_0 = arith.constant 0 : index
    %0 = vector.load %arg1[%c0, %c0_0] : memref<8x32xf32, #tpu.memory_space<vmem>>, vector<8x32xf32>
    %1 = arith.truncf %0 : vector<8x32xf32> to vector<8x32xbf16>
    %c0_1 = arith.constant 0 : index
    %c0_2 = arith.constant 0 : index
    %2 = vector.load %arg2[%c0_1, %c0_2] : memref<32x128xbf16, #tpu.memory_space<vmem>>, vector<32x128xbf16>
    %cst = arith.constant dense<0.000000e+00> : vector<8x128xf32>
    %3 = tpu.matmul %1, %2, %cst {dimension_numbers = #tpu.dot_dimension_numbers<[1], [0], [0], [1], [0, 0, 1, 1], [], []>} : vector<8x32xbf16>, vector<32x128xbf16>, vector<8x128xf32> -> vector<8x128xf32>
    %c0_3 = arith.constant 0 : index
    %c0_4 = arith.constant 0 : index
    %4 = vector.load %arg3[%c0_3, %c0_4] : memref<1x128xf32, #tpu.memory_space<vmem>>, vector<1x128xf32>
    %5 = vector.broadcast %4 : vector<1x128xf32> to vector<8x128xf32>
    %6 = arith.addf %3, %5 : vector<8x128xf32>
    %cst_5 = arith.constant 0.000000e+00 : f32
    %7 = vector.broadcast %cst_5 : f32 to vector<8x128xf32>
    %8 = arith.maximumf %6, %7 : vector<8x128xf32>
    %9 = arith.truncf %8 : vector<8x128xf32> to vector<8x128xbf16>
    %c0_6 = arith.constant 0 : index
    %c0_7 = arith.constant 0 : index
    %10 = vector.load %arg4[%c0_6, %c0_7] : memref<128x128xbf16, #tpu.memory_space<vmem>>, vector<128x128xbf16>
    %cst_8 = arith.constant dense<0.000000e+00> : vector<8x128xf32>
    %11 = tpu.matmul %9, %10, %cst_8 {dimension_numbers = #tpu.dot_dimension_numbers<[1], [0], [0], [1], [0, 0, 1, 1], [], []>} : vector<8x128xbf16>, vector<128x128xbf16>, vector<8x128xf32> -> vector<8x128xf32>
    %12 = vector.extract_strided_slice %11 {offsets = [0, 0], sizes = [8, 48], strides = [1, 1]} : vector<8x128xf32> to vector<8x48xf32>
    %c0_9 = arith.constant 0 : index
    %c0_10 = arith.constant 0 : index
    %13 = vector.load %arg5[%c0_9, %c0_10] : memref<1x48xf32, #tpu.memory_space<vmem>>, vector<1x48xf32>
    %14 = vector.broadcast %13 : vector<1x48xf32> to vector<8x48xf32>
    %15 = arith.addf %12, %14 : vector<8x48xf32>
    %c0_11 = arith.constant 0 : index
    %c0_12 = arith.constant 0 : index
    %16 = vector.load %arg6[%c0_11, %c0_12] : memref<8x48xf32, #tpu.memory_space<vmem>>, vector<8x48xf32>
    tpu.vector_store %arg6[%c0_11, %c0_12], %15 {strides = array<i32>} : memref<8x48xf32, #tpu.memory_space<vmem>>, vector<8x48xf32>,
    return
  }
  func.func @transform_0(%arg0: i32) -> (i32, i32) {
    %c0_i32 = arith.constant 0 : i32
    %c0_i32_0 = arith.constant 0 : i32
    return %arg0, %c0_i32 : i32, i32
  }
  func.func @transform_1(%arg0: i32) -> (i32, i32) {
    %c0_i32 = arith.constant 0 : i32
    %c0_i32_0 = arith.constant 0 : i32
    %c0_i32_1 = arith.constant 0 : i32
    return %c0_i32, %c0_i32_0 : i32, i32
  }
  func.func @transform_2(%arg0: i32) -> (i32, i32) {
    %c0_i32 = arith.constant 0 : i32
    %c0_i32_0 = arith.constant 0 : i32
    %c0_i32_1 = arith.constant 0 : i32
    return %c0_i32, %c0_i32_0 : i32, i32
  }
  func.func @transform_3(%arg0: i32) -> (i32, i32) {
    %c0_i32 = arith.constant 0 : i32
    %c0_i32_0 = arith.constant 0 : i32
    %c0_i32_1 = arith.constant 0 : i32
    return %c0_i32, %c0_i32_0 : i32, i32
  }
  func.func @transform_4(%arg0: i32) -> (i32, i32) {
    %c0_i32 = arith.constant 0 : i32
    %c0_i32_0 = arith.constant 0 : i32
    %c0_i32_1 = arith.constant 0 : i32
    return %c0_i32, %c0_i32_0 : i32, i32
  }
  func.func @transform_5(%arg0: i32) -> (i32, i32) {
    %c0_i32 = arith.constant 0 : i32
    %c0_i32_0 = arith.constant 0 : i32
    return %arg0, %c0_i32 : i32, i32
  }
}

</mosaic_0001>

<llo_original>
// kernel: tpu_custom_call.1
$region0: #{tpu_custom_call.1}
  #allocation0 [shape = 'u32[]', space=smem, size = 0x4, offset = 0x4, fixed_abs, tag = 'smem constant byte address 0x4 - core index']
  #allocation1 [shape = 'u32[144,128]{1,0:T(1,128)}', space=vmem, size = 0x12000, scoped, tag = 'internal scratch']
  %s0 = inlined_call_operand.hbm [shape: f32[8,32], index: 0, kind: input, shape index: {}]
  %s1 = inlined_call_operand.hbm [shape: bf16[32,128], index: 1, kind: input, shape index: {}]
  %s2 = inlined_call_operand.vmem [shape: f32[1,128], index: 2, kind: input, shape index: {}]
  %s3 = inlined_call_operand.hbm [shape: bf16[128,128], index: 3, kind: input, shape index: {}]
  %s4 = inlined_call_operand.vmem [shape: f32[1,48], index: 4, kind: input, shape index: {}]
  %s5 = inlined_call_operand.hbm [shape: f32[8,48], index: 5, kind: output, shape index: {}]
  %s6 = sld [smem:[#allocation0]]
  $region42: #{tpu_custom_call.1} parent=0
    _
  %s8 = ssub.s32 1, %s6
  %s9 = scalar_select 0, %s8, %s6
  $region1: #{tpu_custom_call.1} parent=0
    #allocation2 [shape = 'u8[4096]{0}', space=vmem, size = 0x1000, scoped, tag = 'input window, operand 0, single buffered']
    #allocation3 [shape = 's32[1]{0}', space=sflag, size = 0x4, scoped, tag = 'scoped memory for tpu_custom_call.1']
    #allocation4 [shape = 's32[1]{0}', space=sflag, size = 0x4, scoped, tag = 'scoped memory for tpu_custom_call.1']
    #allocation5 [shape = 'u8[8192]{0}', space=vmem, size = 0x2000, scoped, tag = 'input window, operand 1, single buffered']
    #allocation6 [shape = 's32[1]{0}', space=sflag, size = 0x4, scoped, tag = 'scoped memory for tpu_custom_call.1']
    #allocation7 [shape = 'u8[32768]{0}', space=vmem, size = 0x8000, scoped, tag = 'input window, operand 3, single buffered']
    #allocation8 [shape = 'u8[4096]{0}', space=vmem, size = 0x1000, scoped, tag = 'output window, operand 0, single buffered']
    %10 = vsyncpa [#allocation3], 0
    %11 = vsyncpa [#allocation6], 0
    %12 = vsyncpa [#allocation4], 0
    // Predicated region
    $region2: #{tpu_custom_call.1} parent=1 // pred_check
      _
    $region3: #{tpu_custom_call.1} parent=1 // pred_check_branch
      %14 = sbr.rel (0) target = $region5
    $region4: #{tpu_custom_call.1} parent=1 // pred_region
      %s16 = ssub.s32 128, 128
      %17 = vsyncadd [#allocation3], %s16
      %s19 = sshll.u32 [#allocation2], 4
      %s20 = int_to_ptr.vmem [resolvable:$true] %s19
      %22 = dma.hbm_to_vmem [thread:$0]  %s0, 128, %s20, [#allocation3]
    $region5: #{tpu_custom_call.1} parent=1 // pred_fallthru
      _
    // Predicated region
    $region6: #{tpu_custom_call.1} parent=1 // pred_check
      _
    $region7: #{tpu_custom_call.1} parent=1 // pred_check_branch
      %24 = sbr.rel (0) target = $region9
    $region8: #{tpu_custom_call.1} parent=1 // pred_region
      %s26 = ssub.s32 256, 256
      %27 = vsyncadd [#allocation6], %s26
      %s28 = sshll.u32 [#allocation5], 4
      %s29 = int_to_ptr.vmem [resolvable:$true] %s28
      %34 = dma.hbm_to_vmem [thread:$0]  %s1, 256, %s29, [#allocation6], 64, 64, 4
    $region9: #{tpu_custom_call.1} parent=1 // pred_fallthru
      _
    // Predicated region
    $region10: #{tpu_custom_call.1} parent=1 // pred_check
      _
    $region11: #{tpu_custom_call.1} parent=1 // pred_check_branch
      %36 = sbr.rel (0) target = $region13
    $region12: #{tpu_custom_call.1} parent=1 // pred_region
      _
    $region13: #{tpu_custom_call.1} parent=1 // pred_fallthru
      _
    // Predicated region
    $region14: #{tpu_custom_call.1} parent=1 // pred_check
      _
    $region15: #{tpu_custom_call.1} parent=1 // pred_check_branch
      %38 = sbr.rel (0) target = $region17
    $region16: #{tpu_custom_call.1} parent=1 // pred_region
      %s40 = ssub.s32 1024, 1024
      %41 = vsyncadd [#allocation6], %s40
      %s42 = sshll.u32 [#allocation7], 4
      %s43 = int_to_ptr.vmem [resolvable:$true] %s42
      %48 = dma.hbm_to_vmem [thread:$0]  %s3, 1024, %s43, [#allocation6], 64, 64, 4
    $region17: #{tpu_custom_call.1} parent=1 // pred_fallthru
      _
    // Predicated region
    $region18: #{tpu_custom_call.1} parent=1 // pred_check
      _
    $region19: #{tpu_custom_call.1} parent=1 // pred_check_branch
      %50 = sbr.rel (0) target = $region21
    $region20: #{tpu_custom_call.1} parent=1 // pred_region
      _
    $region21: #{tpu_custom_call.1} parent=1 // pred_fallthru
      _
    // Predicated region
    $region22: #{tpu_custom_call.1} parent=1 // pred_check
      _
    $region23: #{tpu_custom_call.1} parent=1 // pred_check_branch
      %52 = sbr.rel (0) target = $region25
    $region24: #{tpu_custom_call.1} parent=1 // pred_region
      %53 = dma.done [#allocation3], 128
    $region25: #{tpu_custom_call.1} parent=1 // pred_fallthru
      _
    // Predicated region
    $region26: #{tpu_custom_call.1} parent=1 // pred_check
      _
    $region27: #{tpu_custom_call.1} parent=1 // pred_check_branch
      %55 = sbr.rel (0) target = $region29
    $region28: #{tpu_custom_call.1} parent=1 // pred_region
      %56 = dma.done [#allocation6], 256
    $region29: #{tpu_custom_call.1} parent=1 // pred_fallthru
      _
    // Predicated region
    $region30: #{tpu_custom_call.1} parent=1 // pred_check
      _
    $region31: #{tpu_custom_call.1} parent=1 // pred_check_branch
      %58 = sbr.rel (0) target = $region33
    $region32: #{tpu_custom_call.1} parent=1 // pred_region
      %59 = dma.done [#allocation6], 1024
    $region33: #{tpu_custom_call.1} parent=1 // pred_fallthru
      _
    %v61 = vld [vmem:[#allocation2] sm:$0xff]
    %v62 = vpack.c.bf16 %v61, %v61
    %v63 = vld [vmem:[#allocation5] sm:$0xf]
    %v64 = vld [vmem:[#allocation5 + $0x4] sm:$0xf]
    %v65 = vld [vmem:[#allocation5 + $0x8] sm:$0xf]
    %v66 = vld [vmem:[#allocation5 + $0xc] sm:$0xf]
    %v67 = vld [vmem:[%s2] sm:$0x1]
    %v69 = vlaneseq
    %v70 = vshrl.u32 %v69, 7
    %v71 = vsub.s32 0, %v70
    %v72 = vrot.slane %v67, %v71
    %v78 = vunpack.c.l.b16 %v63
    %v79 = vunpack.c.l.b16 %v64
    %v80 = vunpack.c.l.b16 %v65
    %v81 = vunpack.c.l.b16 %v66
    %v82 = vpack.c.b16 %v79, %v78
    %v83 = vpack.c.b16 %v81, %v80
    %vm86 = vcmask 261120
    %v88 = vsel %vm86, %v62, 0
    %90 = vmatprep.subr.bf16.mxu0 0
    %91 = vmatpush1.bf16.msra.mxu0 0
    %92 = vmatprep.subr.bf16.mxu0 0
    %93 = vmatpush1.bf16.msra.mxu0 0
    %94 = vmatprep.subr.bf16.mxu0 0
    %95 = vmatpush1.bf16.msra.mxu0 0
    %96 = vmatprep.subr.bf16.mxu0 0
    %97 = vmatpush1.bf16.msra.mxu0 0
    %98 = vmatprep.subr.bf16.mxu0 0
    %99 = vmatpush1.bf16.msra.mxu0 0
    %100 = vmatprep.subr.bf16.mxu0 0
    %101 = vmatpush1.bf16.msra.mxu0 0
    %102 = vmatprep.subr.bf16.mxu0 0
    %103 = vmatpush1.bf16.msra.mxu0 %v83
    %104 = vmatprep.subr.bf16.mxu0 0
    %105 = vmatpush1.bf16.msra.mxu0 %v82
    %106 = vmatprep.subr.bf16.mxu0 0
    %107 = vmatpush2.bf16.msra.mxu0 0
    %108 = vmatprep.subr.bf16.mxu0 0
    %109 = vmatpush2.bf16.msra.mxu0 0
    %110 = vmatprep.subr.bf16.mxu0 0
    %111 = vmatpush2.bf16.msra.mxu0 0
    %112 = vmatprep.subr.bf16.mxu0 0
    %113 = vmatpush2.bf16.msra.mxu0 0
    %114 = vmatprep.subr.bf16.mxu0 0
    %115 = vmatpush2.bf16.msra.mxu0 0
    %116 = vmatprep.subr.bf16.mxu0 0
    %117 = vmatpush2.bf16.msra.mxu0 0
    %118 = vmatprep.subr.bf16.mxu0 0
    %119 = vmatpush2.bf16.msra.mxu0 0
    %120 = vmatprep.subr.bf16.mxu0 0
    %121 = vmatpush2.bf16.msra.mxu0 0
    %122 = vmatprep.mubr.bf16.mxu0 0
    %123 = vmatmul.mubr.bf16.gmra.mxu0 %v88
    %v124 = vpop.f32.mrf.mxu0
    %v125 = vadd.f32 %v72, %v124
    %v126 = vpop.f32.mrf.mxu0
    %v127 = vpop.f32.mrf.mxu0
    %v128 = vpop.f32.mrf.mxu0
    %129 = vdwg.mxu0
    %v130 = vmax.f32 %v125, 0.0
    %v131 = vpack.c.bf16 %v130, %v130
    %v132 = vld [vmem:[#allocation7] sm:$0xf]
    %v133 = vld [vmem:[#allocation7 + $0x4] sm:$0xf]
    %v134 = vld [vmem:[#allocation7 + $0x8] sm:$0xf]
    %v135 = vld [vmem:[#allocation7 + $0xc] sm:$0xf]
    %v136 = vld [vmem:[#allocation7 + $0x10] sm:$0xf]
    %v137 = vld [vmem:[#allocation7 + $0x14] sm:$0xf]
    %v138 = vld [vmem:[#allocation7 + $0x18] sm:$0xf]
    %v139 = vld [vmem:[#allocation7 + $0x1c] sm:$0xf]
    %v140 = vld [vmem:[#allocation7 + $0x20] sm:$0xf]
    %v141 = vld [vmem:[#allocation7 + $0x24] sm:$0xf]
    %v142 = vld [vmem:[#allocation7 + $0x28] sm:$0xf]
    %v143 = vld [vmem:[#allocation7 + $0x2c] sm:$0xf]
    %v144 = vld [vmem:[#allocation7 + $0x30] sm:$0xf]
    %v145 = vld [vmem:[#allocation7 + $0x34] sm:$0xf]
    %v146 = vld [vmem:[#allocation7 + $0x38] sm:$0xf]
    %v147 = vld [vmem:[#allocation7 + $0x3c] sm:$0xf]
    %v164 = vunpack.c.l.b16 %v132
    %v165 = vunpack.c.l.b16 %v133
    %v166 = vunpack.c.l.b16 %v134
    %v167 = vunpack.c.l.b16 %v135
    %v168 = vunpack.c.l.b16 %v136
    %v169 = vunpack.c.l.b16 %v137
    %v170 = vunpack.c.l.b16 %v138
    %v171 = vunpack.c.l.b16 %v139
    %v172 = vunpack.c.l.b16 %v140
    %v173 = vunpack.c.l.b16 %v141
    %v174 = vunpack.c.l.b16 %v142
    %v175 = vunpack.c.l.b16 %v143
    %v176 = vunpack.c.l.b16 %v144
    %v177 = vunpack.c.l.b16 %v145
    %v178 = vunpack.c.l.b16 %v146
    %v179 = vunpack.c.l.b16 %v147
    %v180 = vpack.c.b16 %v165, %v164
    %v181 = vpack.c.b16 %v167, %v166
    %v182 = vpack.c.b16 %v169, %v168
    %v183 = vpack.c.b16 %v171, %v170
    %v184 = vpack.c.b16 %v173, %v172
    %v185 = vpack.c.b16 %v175, %v174
    %v186 = vpack.c.b16 %v177, %v176
    %v187 = vpack.c.b16 %v179, %v178
    %196 = vmatprep.subr.bf16.mxu0 0
    %197 = vmatpush1.bf16.msra.mxu0 %v187
    %198 = vmatprep.subr.bf16.mxu0 0
    %199 = vmatpush1.bf16.msra.mxu0 %v186
    %200 = vmatprep.subr.bf16.mxu0 0
    %201 = vmatpush1.bf16.msra.mxu0 %v185
    %202 = vmatprep.subr.bf16.mxu0 0
    %203 = vmatpush1.bf16.msra.mxu0 %v184
    %204 = vmatprep.subr.bf16.mxu0 0
    %205 = vmatpush1.bf16.msra.mxu0 %v183
    %206 = vmatprep.subr.bf16.mxu0 0
    %207 = vmatpush1.bf16.msra.mxu0 %v182
    %208 = vmatprep.subr.bf16.mxu0 0
    %209 = vmatpush1.bf16.msra.mxu0 %v181
    %210 = vmatprep.subr.bf16.mxu0 0
    %211 = vmatpush1.bf16.msra.mxu0 %v180
    %212 = vmatprep.subr.bf16.mxu0 0
    %213 = vmatpush2.bf16.msra.mxu0 0
    %214 = vmatprep.subr.bf16.mxu0 0
    %215 = vmatpush2.bf16.msra.mxu0 0
    %216 = vmatprep.subr.bf16.mxu0 0
    %217 = vmatpush2.bf16.msra.mxu0 0
    %218 = vmatprep.subr.bf16.mxu0 0
    %219 = vmatpush2.bf16.msra.mxu0 0
    %220 = vmatprep.subr.bf16.mxu0 0
    %221 = vmatpush2.bf16.msra.mxu0 0
    %222 = vmatprep.subr.bf16.mxu0 0
    %223 = vmatpush2.bf16.msra.mxu0 0
    %224 = vmatprep.subr.bf16.mxu0 0
    %225 = vmatpush2.bf16.msra.mxu0 0
    %226 = vmatprep.subr.bf16.mxu0 0
    %227 = vmatpush2.bf16.msra.mxu0 0
    %228 = vmatprep.mubr.bf16.mxu0 0
    %229 = vmatmul.mubr.bf16.gmra.mxu0 %v131
    %v230 = vpop.f32.mrf.mxu0
    %v231 = vadd.f32 0.0, %v230
    %v232 = vpop.f32.mrf.mxu0
    %v233 = vpop.f32.mrf.mxu0
    %v234 = vpop.f32.mrf.mxu0
    %235 = vdwg.mxu0
    %v236 = vld [vmem:[%s4] sm:$0x1]
    %v238 = vlaneseq
    %v239 = vshrl.u32 %v238, 7
    %v240 = vsub.s32 0, %v239
    %v241 = vrot.slane %v236, %v240
    %v243 = vadd.f32 %v231, %v241
    %vm244 = vcmask 392192
    %245 = vst.msk [vmem:[#allocation8] sm:$0xff] %vm244, %v243
    // Predicated region
    $region34: #{tpu_custom_call.1} parent=1 // pred_check
      _
    $region35: #{tpu_custom_call.1} parent=1 // pred_check_branch
      %247 = sbr.rel (0) target = $region37
    $region36: #{tpu_custom_call.1} parent=1 // pred_region
      %s249 = ssub.s32 128, 128
      %250 = vsyncadd [#allocation4], %s249
      %s252 = sshll.u32 [#allocation8], 4
      %s253 = int_to_ptr.vmem [resolvable:$true] %s252
      %255 = dma.vmem_to_hbm [thread:$0]  %s253, 128, %s5, [#allocation4]
    $region37: #{tpu_custom_call.1} parent=1 // pred_fallthru
      _
    // Predicated region
    $region38: #{tpu_custom_call.1} parent=1 // pred_check
      _
    $region39: #{tpu_custom_call.1} parent=1 // pred_check_branch
      %257 = sbr.rel (0) target = $region41
    $region40: #{tpu_custom_call.1} parent=1 // pred_region
      %258 = dma.done [#allocation4], 128
    $region41: #{tpu_custom_call.1} parent=1 // pred_fallthru
      _
    %259 = vsyncpa [#allocation3], 1
    %260 = vsyncpa [#allocation6], 1
    %261 = vsyncpa [#allocation4], 1

</llo_original>
